<compile_context>
chip_gen: v6e
topology: v6e:2x2x1
jax: 0.10.0
libtpu: 0.0.40
codegen_flags: <defaults>
</compile_context>

<pallas_src>
import functools

import jax
import jax.numpy as jnp
from jax.experimental import pallas as pl
from jax.experimental.pallas import tpu as pltpu


# --------------------------------------------------------------------------
# Kernels
# --------------------------------------------------------------------------
def _addlinear_kernel_accout(a_ref, b_ref, w_ref, bias_ref, o_ref, *,
                             cast_dtype):
    """f32 output: accumulate straight into the resident output block."""
    k = pl.program_id(2)

    @pl.when(k == 0)
    def _init():
        # Fold the bias into the accumulator init (no extra epilogue pass).
        o_ref[...] = jnp.broadcast_to(
            bias_ref[...].astype(jnp.float32), o_ref.shape)

    s = a_ref[...] + b_ref[...]                # fused elementwise add (f32, VPU)
    if cast_dtype is not None:                 # bf16 MXU operand (w already bf16)
        s = s.astype(cast_dtype)
    o_ref[...] += jnp.dot(s, w_ref[...], preferred_element_type=jnp.float32)


def _addlinear_kernel_scratch(a_ref, b_ref, w_ref, bias_ref, o_ref, acc_ref, *,
                              cast_dtype):
    """Low-precision output: keep an f32 VMEM accumulator, store at k==last."""
    k = pl.program_id(2)

    @pl.when(k == 0)
    def _init():
        acc_ref[...] = jnp.broadcast_to(
            bias_ref[...].astype(jnp.float32), acc_ref.shape)

    s = a_ref[...] + b_ref[...]
    if cast_dtype is not None:
        s = s.astype(cast_dtype)
    acc_ref[...] += jnp.dot(s, w_ref[...], preferred_element_type=jnp.float32)

    @pl.when(k == pl.num_programs(2) - 1)
    def _store():
        o_ref[...] = acc_ref[...].astype(o_ref.dtype)


# --------------------------------------------------------------------------
# Tile selection
# --------------------------------------------------------------------------
def _round_up(x, m):
    return ((x + m - 1) // m) * m


def _fit_tile(dim, desired, granule):
    """Largest multiple of `granule` <= min(desired, dim); when the array dim
    is smaller than one granule, use the full dim (legal per the (8,128) rule)."""
    if dim < granule:
        return dim
    return max(granule, (min(desired, dim) // granule) * granule)


def _choose_tiles(B, D_in, D_out, w_itemsize, out_itemsize,
                  tm_max, tk_max, budget_bytes):
    """Pick (tm, tn, tk) whose double-buffered working set fits a v7x-safe budget."""
    tm = _fit_tile(B, tm_max, 8)
    tk = min(tk_max, _round_up(D_in, 128))        # K is zero-padded to tk anyway
    tn = _fit_tile(D_out, 1 << 30, 128)           # try to collapse the j axis

    def working_set(tm_, tn_, tk_):
        acts = 2 * 2 * tm_ * tk_ * 4                    # a, b (f32, double-buffered)
        wts = 2 * (tk_ * tn_ * w_itemsize + tn_ * 4)    # w + bias (double-buffered)
        outs = 2 * tm_ * tn_ * out_itemsize             # resident output block
        return acts + wts + outs

    # Shrink tn first (multiples of 256 for the 256-wide v6e/v7x MXU),
    # then tk, then tm, until the working set fits the budget.
    while working_set(tm, tn, tk) > budget_bytes and tn > 256:
        tn = max(256, _round_up(tn // 2, 256))
    while working_set(tm, tn, tk) > budget_bytes and tk > 256:
        tk = max(256, _round_up(tk // 2, 256))
    while working_set(tm, tn, tk) > budget_bytes and tm > 8:
        tm = max(8, _round_up(tm // 2, 8))

    # v7x megacore: keep >= 2 blocks on a "parallel" axis so the 2nd TC works.
    if pl.cdiv(B, tm) * pl.cdiv(D_out, tn) < 2 and B > 8:
        tm = max(8, _round_up(-(-B // 2), 8))

    return tm, tn, tk, working_set(tm, tn, tk)


# --------------------------------------------------------------------------
# Wrapper (the UnpackInput-equivalent forward)
# --------------------------------------------------------------------------
def unpack_input_forward(x, w, bias, *, tm=512, tk=512,
                         mxu_dtype=jnp.bfloat16, out_dtype=None,
                         vmem_budget_bytes=24 * 2**20):
    """Pallas equivalent of UnpackInput(AddLinear)(x) where x is a tuple (a, b).

    a, b : [B, D_in]      float32  (the tuple that UnpackInput.forward unpacks)
    w    : [D_in, D_out]  float32  (nn.Linear weight, pre-transposed)
    bias : [D_out] or [1, D_out]
    returns [B, D_out]
    """
    a, b = x                                   # <-- UnpackInput's tuple unpacking
    B, D_in = a.shape
    D_out = w.shape[1]
    out_dtype = a.dtype if out_dtype is None else out_dtype

    bias = bias.reshape(1, D_out)              # normalize PyTorch's (D_out,) layout

    # Cast the weight ONCE host-side: halves its HBM stream and removes the
    # per-grid-step VPU re-cast of the same w tile inside the kernel.
    w_kernel = w.astype(mxu_dtype) if mxu_dtype is not None else w
    w_itemsize = jnp.dtype(w_kernel.dtype).itemsize
    out_itemsize = jnp.dtype(out_dtype).itemsize

    tm, tn, tk, working = _choose_tiles(
        B, D_in, D_out, w_itemsize, out_itemsize, tm, tk, vmem_budget_bytes)

    # Only the K tail needs zero padding for correctness (it feeds the MXU
    # reduction).  M/N tails are handled by cdiv grids + masked output stores,
    # so no full-array pad copies for those axes.
    Kp = _round_up(D_in, tk)
    if Kp != D_in:
        pad_k = Kp - D_in
        a = jnp.pad(a, ((0, 0), (0, pad_k)))
        b = jnp.pad(b, ((0, 0), (0, pad_k)))
        w_kernel = jnp.pad(w_kernel, ((0, pad_k), (0, 0)))

    n_i = pl.cdiv(B, tm)
    n_j = pl.cdiv(D_out, tn)
    n_k = Kp // tk
    grid = (n_i, n_j, n_k)

    accumulate_in_out = jnp.dtype(out_dtype) == jnp.float32
    if accumulate_in_out:
        kernel = functools.partial(_addlinear_kernel_accout,
                                   cast_dtype=mxu_dtype)
        scratch_shapes = []
    else:
        kernel = functools.partial(_addlinear_kernel_scratch,
                                   cast_dtype=mxu_dtype)
        scratch_shapes = [pltpu.VMEM((tm, tn), jnp.float32)]

    vmem_limit = int(min(64 * 2**20, max(32 * 2**20, 2 * working)))

    cost = pl.CostEstimate(
        flops=2 * B * Kp * D_out + B * Kp,
        transcendentals=0,
        bytes_accessed=(n_j * 2 * B * Kp * 4              # a, b re-read per j block
                        + n_i * Kp * D_out * w_itemsize   # w re-read per i block
                        + n_i * D_out * 4                 # bias
                        + B * D_out * out_itemsize),      # output
    )

    return pl.pallas_call(
        kernel,
        out_shape=jax.ShapeDtypeStruct((B, D_out), out_dtype),
        grid_spec=pltpu.PrefetchScalarGridSpec(
            num_scalar_prefetch=0,
            grid=grid,
            in_specs=[
                pl.BlockSpec((tm, tk), lambda i, j, k: (i, k)),   # a
                pl.BlockSpec((tm, tk), lambda i, j, k: (i, k)),   # b
                pl.BlockSpec((tk, tn), lambda i, j, k: (k, j)),   # w (bf16 by default)
                pl.BlockSpec((1, tn), lambda i, j, k: (0, j)),    # bias slice
            ],
            out_specs=pl.BlockSpec((tm, tn), lambda i, j, k: (i, j)),
            scratch_shapes=scratch_shapes,
        ),
        compiler_params=pltpu.CompilerParams(
            dimension_semantics=("parallel", "parallel", "arbitrary"),
            vmem_limit_bytes=vmem_limit,
        ),
        cost_estimate=cost,
    )(a, b, w_kernel, bias)


if __name__ == "__main__":
    key = jax.random.PRNGKey(0)
    k_a, k_b, k_w, k_bias = jax.random.split(key, 4)

    # ---- Case 1: small, tile-unaligned shapes; exact f32 MXU path ----------
    # Exercises K zero-padding, partial M/N blocks (masked stores), 1-D bias.
    B, D_in, D_out = 13, 70, 40
    a = jax.random.normal(k_a, (B, D_in), dtype=jnp.float32)
    b = jax.random.normal(k_b, (B, D_in), dtype=jnp.float32)
    w = jax.random.normal(k_w, (D_in, D_out), dtype=jnp.float32) * 0.05
    bias = jax.random.normal(k_bias, (D_out,), dtype=jnp.float32) * 0.05

    y = jax.block_until_ready(
        unpack_input_forward((a, b), w, bias, mxu_dtype=None))
    y_ref = jnp.dot(a + b, w, precision=jax.lax.Precision.HIGHEST) + bias[None, :]
    assert y.shape == (B, D_out)
    assert jnp.allclose(y, y_ref, atol=1e-3, rtol=1e-3)

    # ---- Case 2: moderate aligned shapes; default bf16-MXU, multi-block ----
    # Grid has >=2 i blocks (megacore split) and 2 reduction steps along K.
    B, D_in, D_out = 256, 1024, 512
    a = jax.random.normal(k_a, (B, D_in), dtype=jnp.float32)
    b = jax.random.normal(k_b, (B, D_in), dtype=jnp.float32)
    w = jax.random.normal(k_w, (D_in, D_out), dtype=jnp.float32) * 0.05
    bias = jax.random.normal(k_bias, (1, D_out), dtype=jnp.float32) * 0.05

    y = jax.block_until_ready(unpack_input_forward((a, b), w, bias))
    # Reference uses the same bf16 MXU operands (f32 accumulation) as the kernel.
    y_ref = jnp.dot((a + b).astype(jnp.bfloat16), w.astype(jnp.bfloat16),
                    preferred_element_type=jnp.float32) + bias
    assert y.shape == (B, D_out)
    assert jnp.allclose(y, y_ref, atol=2e-2, rtol=2e-2)

    print("KERNEL_OK")
</pallas_src>

<mosaic_0001>
module attributes {stable_mosaic.version = 11 : i64} {
  func.func @_addlinear_kernel_accout(%arg0: i32, %arg1: i32, %arg2: i32, %arg3: memref<8x128xf32, #tpu.memory_space<vmem>>, %arg4: memref<8x128xf32, #tpu.memory_space<vmem>>, %arg5: memref<128x40xf32, #tpu.memory_space<vmem>>, %arg6: memref<1x40xf32, #tpu.memory_space<vmem>>, %arg7: memref<8x40xf32, #tpu.memory_space<vmem>>) attributes {dimension_semantics = [#tpu.dimension_semantics<parallel>, #tpu.dimension_semantics<parallel>, #tpu.dimension_semantics<arbitrary>], iteration_bounds = array<i64: 2, 1, 1>, scalar_prefetch = 0 : i64, scratch_operands = 0 : i64, tpu.core_type = #tpu.core_type<tc>, window_params = [{transform_indices = @transform_0, window_bounds = array<i64: 8, 128>}, {transform_indices = @transform_1, window_bounds = array<i64: 8, 128>}, {transform_indices = @transform_2, window_bounds = array<i64: 128, 40>}, {transform_indices = @transform_3, window_bounds = array<i64: 1, 40>}, {transform_indices = @transform_4, window_bounds = array<i64: 8, 40>}]} {
    %c0_i32 = arith.constant 0 : i32
    %0 = arith.cmpi eq, %arg2, %c0_i32 : i32
    %1 = arith.extui %0 : i1 to i32
    %c0_i32_0 = arith.constant 0 : i32
    %2 = arith.cmpi ne, %1, %c0_i32_0 : i32
    scf.if %2 {
      %c0_10 = arith.constant 0 : index
      %c0_11 = arith.constant 0 : index
      %11 = vector.load %arg6[%c0_10, %c0_11] : memref<1x40xf32, #tpu.memory_space<vmem>>, vector<1x40xf32>
      %12 = vector.shape_cast %11 : vector<1x40xf32> to vector<1x40xf32>
      %13 = vector.broadcast %12 : vector<1x40xf32> to vector<8x40xf32>
      %c0_12 = arith.constant 0 : index
      %c0_13 = arith.constant 0 : index
      %14 = vector.load %arg7[%c0_12, %c0_13] : memref<8x40xf32, #tpu.memory_space<vmem>>, vector<8x40xf32>
      tpu.vector_store %arg7[%c0_12, %c0_13], %13 {strides = array<i32>} : memref<8x40xf32, #tpu.memory_space<vmem>>, vector<8x40xf32>,
    } else {
    }
    %c0 = arith.constant 0 : index
    %c0_1 = arith.constant 0 : index
    %3 = vector.load %arg3[%c0, %c0_1] : memref<8x128xf32, #tpu.memory_space<vmem>>, vector<8x128xf32>
    %c0_2 = arith.constant 0 : index
    %c0_3 = arith.constant 0 : index
    %4 = vector.load %arg4[%c0_2, %c0_3] : memref<8x128xf32, #tpu.memory_space<vmem>>, vector<8x128xf32>
    %5 = arith.addf %3, %4 : vector<8x128xf32>
    %c0_4 = arith.constant 0 : index
    %c0_5 = arith.constant 0 : index
    %6 = vector.load %arg7[%c0_4, %c0_5] : memref<8x40xf32, #tpu.memory_space<vmem>>, vector<8x40xf32>
    %c0_6 = arith.constant 0 : index
    %c0_7 = arith.constant 0 : index
    %7 = vector.load %arg5[%c0_6, %c0_7] : memref<128x40xf32, #tpu.memory_space<vmem>>, vector<128x40xf32>
    %cst = arith.constant dense<0.000000e+00> : vector<8x40xf32>
    %8 = tpu.matmul %5, %7, %cst {dimension_numbers = #tpu.dot_dimension_numbers<[1], [0], [0], [1], [0, 0, 1, 1], [], []>} : vector<8x128xf32>, vector<128x40xf32>, vector<8x40xf32> -> vector<8x40xf32>
    %9 = arith.addf %6, %8 : vector<8x40xf32>
    %c0_8 = arith.constant 0 : index
    %c0_9 = arith.constant 0 : index
    %10 = vector.load %arg7[%c0_8, %c0_9] : memref<8x40xf32, #tpu.memory_space<vmem>>, vector<8x40xf32>
    tpu.vector_store %arg7[%c0_8, %c0_9], %9 {strides = array<i32>} : memref<8x40xf32, #tpu.memory_space<vmem>>, vector<8x40xf32>,
    return
  }
  func.func @transform_0(%arg0: i32, %arg1: i32, %arg2: i32) -> (i32, i32) {
    %c0_i32 = arith.constant 0 : i32
    return %arg0, %arg2 : i32, i32
  }
  func.func @transform_1(%arg0: i32, %arg1: i32, %arg2: i32) -> (i32, i32) {
    %c0_i32 = arith.constant 0 : i32
    return %arg0, %arg2 : i32, i32
  }
  func.func @transform_2(%arg0: i32, %arg1: i32, %arg2: i32) -> (i32, i32) {
    %c0_i32 = arith.constant 0 : i32
    return %arg2, %arg1 : i32, i32
  }
  func.func @transform_3(%arg0: i32, %arg1: i32, %arg2: i32) -> (i32, i32) {
    %c0_i32 = arith.constant 0 : i32
    %c0_i32_0 = arith.constant 0 : i32
    return %c0_i32, %arg1 : i32, i32
  }
  func.func @transform_4(%arg0: i32, %arg1: i32, %arg2: i32) -> (i32, i32) {
    %c0_i32 = arith.constant 0 : i32
    return %arg0, %arg1 : i32, i32
  }
}

</mosaic_0001>

<llo_original>
// kernel: tpu_custom_call.1
$region0: #{tpu_custom_call.1}
  #allocation0 [shape = 'u32[]', space=smem, size = 0x4, offset = 0x4, fixed_abs, tag = 'smem constant byte address 0x4 - core index']
  #allocation1 [shape = 'u32[144,128]{1,0:T(1,128)}', space=vmem, size = 0x12000, scoped, tag = 'internal scratch']
  %s0 = inlined_call_operand.vmem [shape: f32[13,128], index: 0, kind: input, shape index: {}]
  %s1 = inlined_call_operand.vmem [shape: f32[13,128], index: 1, kind: input, shape index: {}]
  %s2 = inlined_call_operand.vmem [shape: f32[128,40], index: 2, kind: input, shape index: {}]
  %s3 = inlined_call_operand.vmem [shape: f32[1,40], index: 3, kind: input, shape index: {}]
  %s4 = inlined_call_operand.hbm [shape: f32[13,40], index: 4, kind: output, shape index: {}]
  %s5 = sld [smem:[#allocation0]]
  $region53: #{tpu_custom_call.1} parent=0
    _
  %s7 = ssub.s32 1, %s5
  %s8 = scalar_select 0, %s7, %s5
  $region1: #{tpu_custom_call.1} parent=0
    #allocation2 [shape = 'u8[8192]{0}', space=vmem, size = 0x2000, scoped, tag = 'output window, operand 0']
    #allocation3 [shape = 's32[2]{0}', space=sflag, size = 0x8, scoped, tag = 'scoped memory for tpu_custom_call.1']
    %9 = vsyncpa [#allocation3], 0
    %s10 = scalar_lea.sflag [#allocation3], 1
    %11 = vsyncpa %s10, 0
    loop: start=0, step=1, limit=4
    $region2: #{tpu_custom_call.1} parent=1 // loop_pre_header
      _
    $region3: #{tpu_custom_call.1} parent=1 // loop_header
      %s13 = sphi 0, %s17
      %p14 = scmp.ge.s32.totalorder %s13, 4
      %s20 = sphi 0, %s39
      %s21 = sphi 0, %s35
      %s22 = sphi 0, %s31
      %s23 = sphi 0, %s20
      %s24 = sphi 0, %s21
      %s25 = sphi 0, %s22
      %s26 = sphi 0, %s23
      %s27 = sphi 0, %s24
      %s28 = sphi 0, %s25
      %s44 = sphi 0, %s46
      %s47 = sphi 0, %s44
      %s48 = sphi 0, %s47
      %s64 = sphi 0, %s48
      %s72 = sphi 0, %s74
      %s75 = sphi 0, %s72
      %s76 = sphi 0, %s75
      %s92 = sphi 0, %s76
      %s100 = sphi 0, %s102
      %s103 = sphi 0, %s100
      %s104 = sphi 0, %s103
      %s120 = sphi 0, %s104
      %s126 = sphi 0, %s128
      %s129 = sphi 0, %s126
      %s130 = sphi 0, %s129
      %s146 = sphi 0, %s130
      %s154 = sphi 0, %s156
      %s157 = sphi 0, %s154
      %s158 = sphi 0, %s157
      %s174 = sphi 0, %s158
    $region4: #{tpu_custom_call.1} parent=1 // loop_header_branch
      %16 = sbr.rel (%p14) target = $region8
    $region5: #{tpu_custom_call.1} parent=1 // loop_body
      %s18 = ssub.s32 %s13, 1
      %s19 = ssub.s32 %s13, 2
      %s29 = sadd.s32 1, %s22
      %p30 = scmp.ge.s32.totalorder %s29, 1
      %s31 = scalar_select %p30, 0, %s29
      %s32 = sadd.s32 1, %s21
      %s33 = scalar_select %p30, %s32, %s21
      %p34 = scmp.ge.s32.totalorder %s33, 1
      %s35 = scalar_select %p34, 0, %s33
      %s36 = sadd.s32 1, %s20
      %s37 = scalar_select %p34, %s36, %s20
      %p38 = scmp.ge.s32.totalorder %s37, 2
      %s39 = scalar_select %p38, 0, %s37
      %s40 = ssub.s32 %s20, %s39
      %s41 = ssub.s32 %s22, %s31
      %s42 = sor.u32 %s40, %s41
      %p43 = scmp.eq.s32.totalorder %s42, 0
      %s45 = sadd.s32 %s44, 1
      %s46 = scalar_select %p43, %s44, %s45
      %p49 = pneg %p43
      %p50 = scmp.eq.s32.totalorder %s13, 1
      %p51 = por %p49, %p50
      %p52 = scmp.ne.s32.totalorder %s44, %s47
      %p53 = scmp.eq.s32.totalorder %s13, 0
      %p54 = por %p52, %p53
      %p55 = scmp.ne.s32.totalorder %s44, %s47
      %p56 = scmp.eq.s32.totalorder %s18, 1
      %p57 = por %p55, %p56
      %p58 = scmp.ne.s32.totalorder %s47, %s48
      %p59 = scmp.eq.s32.totalorder %s18, 0
      %p60 = por %p58, %p59
      %p61 = scmp.ne.s32.totalorder %s47, %s48
      %p62 = scmp.eq.s32.totalorder %s19, 1
      %p63 = por %p61, %p62
      %p65 = scmp.ne.s32.totalorder %s48, %s64
      %p66 = scmp.eq.s32.totalorder %s19, 0
      %p67 = por %p65, %p66
      %s68 = ssub.s32 %s20, %s39
      %s69 = ssub.s32 %s22, %s31
      %s70 = sor.u32 %s68, %s69
      %p71 = scmp.eq.s32.totalorder %s70, 0
      %s73 = sadd.s32 %s72, 1
      %s74 = scalar_select %p71, %s72, %s73
      %p77 = pneg %p71
      %p78 = scmp.eq.s32.totalorder %s13, 1
      %p79 = por %p77, %p78
      %p80 = scmp.ne.s32.totalorder %s72, %s75
      %p81 = scmp.eq.s32.totalorder %s13, 0
      %p82 = por %p80, %p81
      %p83 = scmp.ne.s32.totalorder %s72, %s75
      %p84 = scmp.eq.s32.totalorder %s18, 1
      %p85 = por %p83, %p84
      %p86 = scmp.ne.s32.totalorder %s75, %s76
      %p87 = scmp.eq.s32.totalorder %s18, 0
      %p88 = por %p86, %p87
      %p89 = scmp.ne.s32.totalorder %s75, %s76
      %p90 = scmp.eq.s32.totalorder %s19, 1
      %p91 = por %p89, %p90
      %p93 = scmp.ne.s32.totalorder %s76, %s92
      %p94 = scmp.eq.s32.totalorder %s19, 0
      %p95 = por %p93, %p94
      %s96 = ssub.s32 %s22, %s31
      %s97 = ssub.s32 %s21, %s35
      %s98 = sor.u32 %s96, %s97
      %p99 = scmp.eq.s32.totalorder %s98, 0
      %s101 = sadd.s32 %s100, 1
      %s102 = scalar_select %p99, %s100, %s101
      %p105 = pneg %p99
      %p106 = scmp.eq.s32.totalorder %s13, 1
      %p107 = por %p105, %p106
      %p108 = scmp.ne.s32.totalorder %s100, %s103
      %p109 = scmp.eq.s32.totalorder %s13, 0
      %p110 = por %p108, %p109
      %p111 = scmp.ne.s32.totalorder %s100, %s103
      %p112 = scmp.eq.s32.totalorder %s18, 1
      %p113 = por %p111, %p112
      %p114 = scmp.ne.s32.totalorder %s103, %s104
      %p115 = scmp.eq.s32.totalorder %s18, 0
      %p116 = por %p114, %p115
      %p117 = scmp.ne.s32.totalorder %s103, %s104
      %p118 = scmp.eq.s32.totalorder %s19, 1
      %p119 = por %p117, %p118
      %p121 = scmp.ne.s32.totalorder %s104, %s120
      %p122 = scmp.eq.s32.totalorder %s19, 0
      %p123 = por %p121, %p122
      %s124 = ssub.s32 %s21, %s35
      %p125 = scmp.eq.s32.totalorder %s124, 0
      %s127 = sadd.s32 %s126, 1
      %s128 = scalar_select %p125, %s126, %s127
      %p131 = pneg %p125
      %p132 = scmp.eq.s32.totalorder %s13, 1
      %p133 = por %p131, %p132
      %p134 = scmp.ne.s32.totalorder %s126, %s129
      %p135 = scmp.eq.s32.totalorder %s13, 0
      %p136 = por %p134, %p135
      %p137 = scmp.ne.s32.totalorder %s126, %s129
      %p138 = scmp.eq.s32.totalorder %s18, 1
      %p139 = por %p137, %p138
      %p140 = scmp.ne.s32.totalorder %s129, %s130
      %p141 = scmp.eq.s32.totalorder %s18, 0
      %p142 = por %p140, %p141
      %p143 = scmp.ne.s32.totalorder %s129, %s130
      %p144 = scmp.eq.s32.totalorder %s19, 1
      %p145 = por %p143, %p144
      %p147 = scmp.ne.s32.totalorder %s130, %s146
      %p148 = scmp.eq.s32.totalorder %s19, 0
      %p149 = por %p147, %p148
      %s150 = ssub.s32 %s20, %s39
      %s151 = ssub.s32 %s21, %s35
      %s152 = sor.u32 %s150, %s151
      %p153 = scmp.eq.s32.totalorder %s152, 0
      %s155 = sadd.s32 %s154, 1
      %s156 = scalar_select %p153, %s154, %s155
      %p159 = pneg %p153
      %p160 = scmp.eq.s32.totalorder %s13, 1
      %p161 = por %p159, %p160
      %p162 = scmp.ne.s32.totalorder %s154, %s157
      %p163 = scmp.eq.s32.totalorder %s13, 0
      %p164 = por %p162, %p163
      %p165 = scmp.ne.s32.totalorder %s154, %s157
      %p166 = scmp.eq.s32.totalorder %s18, 1
      %p167 = por %p165, %p166
      %p168 = scmp.ne.s32.totalorder %s157, %s158
      %p169 = scmp.eq.s32.totalorder %s18, 0
      %p170 = por %p168, %p169
      %p171 = scmp.ne.s32.totalorder %s157, %s158
      %p172 = scmp.eq.s32.totalorder %s19, 1
      %p173 = por %p171, %p172
      %p175 = scmp.ne.s32.totalorder %s158, %s174
      %p176 = scmp.eq.s32.totalorder %s19, 0
      %p177 = por %p175, %p176
      %p178 = scmp.le.s32.totalorder 1, %s13
      %p179 = scmp.lt.s32.totalorder %s13, 3
      %p180 = pnand %p178, %p179
      %p181 = pneg %p180
      // Predicated region
      $region9: #{tpu_custom_call.1} parent=5 // pred_check
        _
      $region10: #{tpu_custom_call.1} parent=5 // pred_check_branch
        %183 = sbr.rel (%p180) target = $region12
      $region11: #{tpu_custom_call.1} parent=5 // pred_region
        %s184 = ssub.s32 %s13, 1
        // Predicated region
        $region13: #{tpu_custom_call.1} parent=11 // pred_check
          %p185 = pneg %p116
        $region14: #{tpu_custom_call.1} parent=11 // pred_check_branch
          %187 = sbr.rel (%p185) target = $region16
        $region15: #{tpu_custom_call.1} parent=11 // pred_region
          %s188 = smul.u32 16, %s25
          %p189 = scmp.lt.s32.totalorder %s188, 15
          %s190 = scalar_select %p189, %s188, 15
          %p191 = scmp.lt.s32.totalorder %s24, 0
          %s192 = scalar_select %p191, %s24, 0
          %s193 = sadd.s32 %s192, %s190
          %s194 = smul.addr %s193, 8
          %s195 = scalar_lea.vmem %s2, %s194
          %s196 = smul.u32 16, %s25
        $region16: #{tpu_custom_call.1} parent=11 // pred_fallthru
          _
        // Predicated region
        $region17: #{tpu_custom_call.1} parent=11 // pred_check
          %p197 = pneg %p142
        $region18: #{tpu_custom_call.1} parent=11 // pred_check_branch
          %199 = sbr.rel (%p197) target = $region20
        $region19: #{tpu_custom_call.1} parent=11 // pred_region
          %p200 = scmp.lt.s32.totalorder %s24, 0
          %s201 = scalar_select %p200, %s24, 0
          %s202 = scalar_lea.vmem %s3, %s201
        $region20: #{tpu_custom_call.1} parent=11 // pred_fallthru
          _
      $region12: #{tpu_custom_call.1} parent=5 // pred_fallthru
        _
      %p203 = scmp.lt.s32.totalorder %s13, 2
      // Predicated region
      $region21: #{tpu_custom_call.1} parent=5 // pred_check
        %p204 = pneg %p203
      $region22: #{tpu_custom_call.1} parent=5 // pred_check_branch
        %206 = sbr.rel (%p204) target = $region24
      $region23: #{tpu_custom_call.1} parent=5 // pred_region
        // Predicated region
        $region25: #{tpu_custom_call.1} parent=23 // pred_check
          %p207 = pneg %p54
        $region26: #{tpu_custom_call.1} parent=23 // pred_check_branch
          %209 = sbr.rel (%p207) target = $region28
        $region27: #{tpu_custom_call.1} parent=23 // pred_region
          %p210 = scmp.lt.s32.totalorder %s20, 1
          %s211 = scalar_select %p210, %s20, 1
          %p212 = scmp.lt.s32.totalorder %s22, 0
          %s213 = scalar_select %p212, %s22, 0
          %s214 = sadd.s32 %s213, %s211
          %s215 = smul.addr %s214, 8
          %s216 = scalar_lea.vmem %s0, %s215
        $region28: #{tpu_custom_call.1} parent=23 // pred_fallthru
          _
        // Predicated region
        $region29: #{tpu_custom_call.1} parent=23 // pred_check
          %p217 = pneg %p82
        $region30: #{tpu_custom_call.1} parent=23 // pred_check_branch
          %219 = sbr.rel (%p217) target = $region32
        $region31: #{tpu_custom_call.1} parent=23 // pred_region
          %p220 = scmp.lt.s32.totalorder %s20, 1
          %s221 = scalar_select %p220, %s20, 1
          %p222 = scmp.lt.s32.totalorder %s22, 0
          %s223 = scalar_select %p222, %s22, 0
          %s224 = sadd.s32 %s223, %s221
          %s225 = smul.addr %s224, 8
          %s226 = scalar_lea.vmem %s1, %s225
        $region32: #{tpu_custom_call.1} parent=23 // pred_fallthru
          _
      $region24: #{tpu_custom_call.1} parent=5 // pred_fallthru
        _
      %p227 = scmp.le.s32.totalorder 1, %s13
      %p228 = scmp.lt.s32.totalorder %s13, 3
      %p229 = pnand %p227, %p228
      %p230 = pneg %p229
      // Predicated region
      $region33: #{tpu_custom_call.1} parent=5 // pred_check
        _
      $region34: #{tpu_custom_call.1} parent=5 // pred_check_branch
        %232 = sbr.rel (%p229) target = $region36
      $region35: #{tpu_custom_call.1} parent=5 // pred_region
        %s233 = ssub.s32 %s13, 1
        %p234 = scmp.lt.s32.totalorder %s23, 1
        %s235 = scalar_select %p234, %s23, 1
        %p236 = scmp.lt.s32.totalorder %s25, 0
        %s237 = scalar_select %p236, %s25, 0
        %s238 = sadd.s32 %s237, %s235
        %s239 = smul.addr %s238, 8
        %s240 = scalar_lea.vmem %s0, %s239
        %p241 = pneg %p60
        %p242 = pneg %p57
        %p243 = scmp.lt.s32.totalorder %s23, 1
        %s244 = scalar_select %p243, %s23, 1
        %p245 = scmp.lt.s32.totalorder %s25, 0
        %s246 = scalar_select %p245, %s25, 0
        %s247 = sadd.s32 %s246, %s244
        %s248 = smul.addr %s247, 8
        %s249 = scalar_lea.vmem %s1, %s248
        %p250 = pneg %p88
        %p251 = pneg %p85
        %s252 = smul.u32 16, %s25
        %p253 = scmp.lt.s32.totalorder %s252, 15
        %s254 = scalar_select %p253, %s252, 15
        %p255 = scmp.lt.s32.totalorder %s24, 0
        %s256 = scalar_select %p255, %s24, 0
        %s257 = sadd.s32 %s256, %s254
        %s258 = smul.addr %s257, 8
        %s259 = scalar_lea.vmem %s2, %s258
        %p260 = pneg %p116
        %p261 = pneg %p113
        %p262 = scmp.lt.s32.totalorder %s24, 0
        %s263 = scalar_select %p262, %s24, 0
        %s264 = scalar_lea.vmem %s3, %s263
        %p265 = pneg %p142
        %p266 = pneg %p139
        %p267 = pneg %p170
        %p268 = pneg %p167
        %s269 = sand.u32 %s157, 1
        %s270 = scalar_lea.sflag [#allocation3], %s269
        %s271 = sand.u32 %s157, 1
        %s272 = smul.addr %s271, 8
        %s273 = scalar_lea.vmem [#allocation2], %s272
        %p274 = scmp.lt.s32.totalorder %s23, 1
        %s275 = scalar_select %p274, %s23, 1
        %p276 = scmp.lt.s32.totalorder %s25, 0
        %s277 = scalar_select %p276, %s25, 0
        %s278 = sadd.s32 %s277, %s275
        %s279 = smul.addr %s278, 8
        %s280 = scalar_lea.vmem %s0, %s279
        %p281 = scmp.lt.s32.totalorder %s23, 1
        %s282 = scalar_select %p281, %s23, 1
        %p283 = scmp.lt.s32.totalorder %s25, 0
        %s284 = scalar_select %p283, %s25, 0
        %s285 = sadd.s32 %s284, %s282
        %s286 = smul.addr %s285, 8
        %s287 = scalar_lea.vmem %s1, %s286
        %s288 = smul.u32 16, %s25
        %p289 = scmp.lt.s32.totalorder %s288, 15
        %s290 = scalar_select %p289, %s288, 15
        %p291 = scmp.lt.s32.totalorder %s24, 0
        %s292 = scalar_select %p291, %s24, 0
        %s293 = sadd.s32 %s292, %s290
        %s294 = smul.addr %s293, 8
        %s295 = scalar_lea.vmem %s2, %s294
        %s296 = smul.u32 16, %s25
        %p297 = scmp.lt.s32.totalorder %s24, 0
        %s298 = scalar_select %p297, %s24, 0
        %s299 = scalar_lea.vmem %s3, %s298
        %p300 = scmp.eq.s32.totalorder %s25, 0
        // Predicated region
        $region37: #{tpu_custom_call.1} parent=35 // pred_check
          %p301 = pneg %p300
        $region38: #{tpu_custom_call.1} parent=35 // pred_check_branch
          %303 = sbr.rel (%p301) target = $region40
        $region39: #{tpu_custom_call.1} parent=35 // pred_region
          %v304 = vld [vmem:[%s299] sm:$0x1]
          %v306 = vlaneseq
          %v307 = vshrl.u32 %v306, 7
          %v308 = vsub.s32 0, %v307
          %v309 = vrot.slane %v304, %v308
          %vm311 = vcmask 326656
          %312 = vst.msk [vmem:[%s273] sm:$0xff] %vm311, %v309
        $region40: #{tpu_custom_call.1} parent=35 // pred_fallthru
          _
        %v313 = vld [vmem:[%s280] sm:$0xff]
        %v314 = vld [vmem:[%s287] sm:$0xff]
        %v315 = vadd.f32 %v313, %v314
        %v316 = vld [vmem:[%s273] sm:$0xff]
        %v317 = vld [vmem:[%s295] sm:$0xff]
        %v318 = vld [vmem:[%s295 + $0x8] sm:$0xff]
        %v319 = vld [vmem:[%s295 + $0x10] sm:$0xff]
        %v320 = vld [vmem:[%s295 + $0x18] sm:$0xff]
        %v321 = vld [vmem:[%s295 + $0x20] sm:$0xff]
        %v322 = vld [vmem:[%s295 + $0x28] sm:$0xff]
        %v323 = vld [vmem:[%s295 + $0x30] sm:$0xff]
        %v324 = vld [vmem:[%s295 + $0x38] sm:$0xff]
        %v325 = vld [vmem:[%s295 + $0x40] sm:$0xff]
        %v326 = vld [vmem:[%s295 + $0x48] sm:$0xff]
        %v327 = vld [vmem:[%s295 + $0x50] sm:$0xff]
        %v328 = vld [vmem:[%s295 + $0x58] sm:$0xff]
        %v329 = vld [vmem:[%s295 + $0x60] sm:$0xff]
        %v330 = vld [vmem:[%s295 + $0x68] sm:$0xff]
        %v331 = vld [vmem:[%s295 + $0x70] sm:$0xff]
        %v332 = vld [vmem:[%s295 + $0x78] sm:$0xff]
        %333 = vmatprep.subr.mxu0 0.0
        %334 = vmatpush1.msra.mxu0 %v332
        %335 = vmatprep.subr.mxu0 0.0
        %336 = vmatpush1.msra.mxu0 %v331
        %337 = vmatprep.subr.mxu0 0.0
        %338 = vmatpush1.msra.mxu0 %v330
        %339 = vmatprep.subr.mxu0 0.0
        %340 = vmatpush1.msra.mxu0 %v329
        %341 = vmatprep.subr.mxu0 0.0
        %342 = vmatpush1.msra.mxu0 %v328
        %343 = vmatprep.subr.mxu0 0.0
        %344 = vmatpush1.msra.mxu0 %v327
        %345 = vmatprep.subr.mxu0 0.0
        %346 = vmatpush1.msra.mxu0 %v326
        %347 = vmatprep.subr.mxu0 0.0
        %348 = vmatpush1.msra.mxu0 %v325
        %349 = vmatprep.subr.mxu0 0.0
        %350 = vmatpush1.msra.mxu0 %v324
        %351 = vmatprep.subr.mxu0 0.0
        %352 = vmatpush1.msra.mxu0 %v323
        %353 = vmatprep.subr.mxu0 0.0
        %354 = vmatpush1.msra.mxu0 %v322
        %355 = vmatprep.subr.mxu0 0.0
        %356 = vmatpush1.msra.mxu0 %v321
        %357 = vmatprep.subr.mxu0 0.0
        %358 = vmatpush1.msra.mxu0 %v320
        %359 = vmatprep.subr.mxu0 0.0
        %360 = vmatpush1.msra.mxu0 %v319
        %361 = vmatprep.subr.mxu0 0.0
        %362 = vmatpush1.msra.mxu0 %v318
        %363 = vmatprep.subr.mxu0 0.0
        %364 = vmatpush1.msra.mxu0 %v317
        %365 = vmatprep.subr.mxu0 0.0
        %366 = vmatpush2.msra.mxu0 0.0
        %367 = vmatprep.subr.mxu0 0.0
        %368 = vmatpush2.msra.mxu0 0.0
        %369 = vmatprep.subr.mxu0 0.0
        %370 = vmatpush2.msra.mxu0 0.0
        %371 = vmatprep.subr.mxu0 0.0
        %372 = vmatpush2.msra.mxu0 0.0
        %373 = vmatprep.subr.mxu0 0.0
        %374 = vmatpush2.msra.mxu0 0.0
        %375 = vmatprep.subr.mxu0 0.0
        %376 = vmatpush2.msra.mxu0 0.0
        %377 = vmatprep.subr.mxu0 0.0
        %378 = vmatpush2.msra.mxu0 0.0
        %379 = vmatprep.subr.mxu0 0.0
        %380 = vmatpush2.msra.mxu0 0.0
        %381 = vmatprep.subr.mxu0 0.0
        %382 = vmatpush2.msra.mxu0 0.0
        %383 = vmatprep.subr.mxu0 0.0
        %384 = vmatpush2.msra.mxu0 0.0
        %385 = vmatprep.subr.mxu0 0.0
        %386 = vmatpush2.msra.mxu0 0.0
        %387 = vmatprep.subr.mxu0 0.0
        %388 = vmatpush2.msra.mxu0 0.0
        %389 = vmatprep.subr.mxu0 0.0
        %390 = vmatpush2.msra.mxu0 0.0
        %391 = vmatprep.subr.mxu0 0.0
        %392 = vmatpush2.msra.mxu0 0.0
        %393 = vmatprep.subr.mxu0 0.0
        %394 = vmatpush2.msra.mxu0 0.0
        %395 = vmatprep.subr.mxu0 0.0
        %396 = vmatpush2.msra.mxu0 0.0
        %397 = vmatprep.mubr.f32.mxu0 0.0
        %398 = vmatmul.mubr.f32.gmra.mxu0 %v315
        %v399 = vpop.f32.mrf.mxu0
        %v400 = vadd.f32 0.0, %v399
        %v401 = vpop.f32.mrf.mxu0
        %402 = vdwg.mxu0
        %v403 = vadd.f32 %v316, %v400
        %vm404 = vcmask 326656
        %405 = vst.msk [vmem:[%s273] sm:$0xff] %vm404, %v403
        %s406 = sand.u32 %s157, 1
        %s407 = scalar_lea.sflag [#allocation3], %s406
        %s408 = sand.u32 %s157, 1
        %s409 = smul.addr %s408, 8
        %s410 = scalar_lea.vmem [#allocation2], %s409
        // Predicated region
        $region41: #{tpu_custom_call.1} parent=35 // pred_check
          %p411 = pneg %p167
        $region42: #{tpu_custom_call.1} parent=35 // pred_check_branch
          %413 = sbr.rel (%p411) target = $region44
        $region43: #{tpu_custom_call.1} parent=35 // pred_region
          %s415 = ssub.s32 128, 128
          %416 = vsyncadd %s407, %s415
          %s417 = sadd.s32 %s24, %s23
          %s418 = smul.addr %s417, 128
          %s419 = scalar_lea.hbm %s4, %s418
          %s421 = sshll.u32 %s410, 4
          %s422 = int_to_ptr.vmem [resolvable:$true] %s421
          %424 = dma.vmem_to_hbm [thread:$0]  %s422, 128, %s419, %s407
        $region44: #{tpu_custom_call.1} parent=35 // pred_fallthru
          _
      $region36: #{tpu_custom_call.1} parent=5 // pred_fallthru
        _
      %p425 = scmp.le.s32.totalorder 2, %s13
      // Predicated region
      $region45: #{tpu_custom_call.1} parent=5 // pred_check
        %p426 = pneg %p425
      $region46: #{tpu_custom_call.1} parent=5 // pred_check_branch
        %428 = sbr.rel (%p426) target = $region48
      $region47: #{tpu_custom_call.1} parent=5 // pred_region
        %s429 = ssub.s32 %s13, 2
        // Predicated region
        $region49: #{tpu_custom_call.1} parent=47 // pred_check
          %p430 = pneg %p173
        $region50: #{tpu_custom_call.1} parent=47 // pred_check_branch
          %432 = sbr.rel (%p430) target = $region52
        $region51: #{tpu_custom_call.1} parent=47 // pred_region
          %s433 = sand.u32 %s158, 1
          %s434 = scalar_lea.sflag [#allocation3], %s433
          %s435 = sand.u32 %s158, 1
          %s436 = smul.addr %s435, 8
          %s437 = scalar_lea.vmem [#allocation2], %s436
          %438 = dma.done %s434, 128
        $region52: #{tpu_custom_call.1} parent=47 // pred_fallthru
          _
      $region48: #{tpu_custom_call.1} parent=5 // pred_fallthru
        _
    $region6: #{tpu_custom_call.1} parent=1 // loop_footer
      %s17 = sadd.s32 1, %s13
    $region7: #{tpu_custom_call.1} parent=1 // loop_footer_branch
      %12 = sbr.rel target = $region3
    $region8: #{tpu_custom_call.1} parent=1 // loop_exit
      _
    %439 = vsyncpa [#allocation3], 1
    %s440 = scalar_lea.sflag [#allocation3], 1
    %441 = vsyncpa %s440, 1

</llo_original>
